<compile_context>
chip_gen: v7x
topology: tpu7x:2x2x1
jax: 0.10.0
libtpu: 0.0.40
codegen_flags: <defaults>
</compile_context>

<pallas_src>
import functools

import jax
import jax.numpy as jnp
from jax.experimental import pallas as pl
from jax.experimental.pallas import tpu as pltpu


def _fused_kernel(x_ref, wb1_ref, b1_ref, wb2_ref, b2_ref, wb3_ref, b3_ref,
                  o_ref, *, H):
    # x_ref  : (M, W*Cin)  f32, M = Nb*H rows (Nb batch elements stacked)
    # wbK_ref: (3*W*Ci, W*Co) bf16 banded weights (3 vertical taps stacked on K)
    # bK_ref : (1, W*Co)   f32 bias tiled over W
    # o_ref  : (M, W*Cout) f32
    M, wci = x_ref.shape
    wco = o_ref.shape[-1]

    # --- Hoisted vertical-padding machinery (built once, reused everywhere).
    masks = {}
    zeros = {}
    for c in sorted({wci, wco}):
        r = jax.lax.broadcasted_iota(jnp.int32, (M, c), 0) % H
        masks[c] = (r >= 1, r < (H - 1))          # "row above" / "row below" valid
        zeros[c] = jnp.zeros((M, c), jnp.float32)

    def taps(a):
        # a: (M, C) f32 -> (M, 3*C) bf16 = [row above | row | row below].
        # Rolls are over the full M rows; the row%H masks zero the rows that
        # would otherwise bleed across batch elements / image borders
        # (this is exactly the pad=1 vertical zero padding).
        c = a.shape[-1]
        m_top, m_bot = masks[c]
        z = zeros[c]
        up = jnp.where(m_top, pltpu.roll(a, 1, 0), z)      # up[q] = a[q-1]
        dn = jnp.where(m_bot, pltpu.roll(a, M - 1, 0), z)  # dn[q] = a[q+1]
        return jnp.concatenate([up, a, dn], axis=-1).astype(jnp.bfloat16)

    def conv(a, wb_ref, b_ref):
        # Single MXU matmul per layer: K = 3*W*Cin; horizontal taps and
        # horizontal zero padding are folded into the banded weight matrix.
        y = jnp.dot(taps(a), wb_ref[...], preferred_element_type=jnp.float32)
        return y + b_ref[...]                     # f32 bias add (broadcast)

    a = x_ref[...].astype(jnp.float32)
    a = conv(a, wb1_ref, b1_ref)                  # conv1 (stays in VMEM/regs)
    a = conv(a, wb2_ref, b2_ref)                  # conv2
    a = conv(a, wb3_ref, b3_ref)                  # conv3
    o_ref[...] = jnp.maximum(a, 0.0).astype(o_ref.dtype)   # fused ReLU


def _banded_weights(w_hwio, W):
    """(3, 3, Cin, Cout) -> (3*W*Cin, W*Cout), bands for kh=0,1,2 stacked on K.

    band_kh[p*Cin + c, w*Cout + co] = sum_kw [p == w + kw - 1] * w[kh, kw, c, co]
    i.e. horizontal taps + pad=1 horizontal zero padding (out-of-range
    diagonals simply dropped) live inside the contraction.
    """
    bands = []
    for kh in range(3):
        m = None
        for kw in range(3):
            shift = jnp.eye(W, W, k=1 - kw, dtype=jnp.float32)  # [p,w]=1 iff p==w+kw-1
            term = jnp.kron(shift, w_hwio[kh, kw])               # (W*Cin, W*Cout)
            m = term if m is None else m + term
        bands.append(m)
    return jnp.concatenate(bands, axis=0)


def _pick_nb(N, H):
    """Batch elements per grid step: target ~256 MXU rows (Nb*H) but keep
    >= 2 grid steps when the batch allows it (one per v7x TensorCore)."""
    target = max(1, pl.cdiv(256, H))
    divisors = [d for d in range(1, N + 1) if N % d == 0]
    nb = max([d for d in divisors if d <= target], default=1)
    if N // nb < 2:
        smaller = [d for d in divisors if N // d >= 2]
        if smaller:
            nb = max(smaller)
    return nb


def _forward_flat(x2d, wb1, b1t, wb2, b2t, wb3, b3t, *, N, H, spatial_w):
    """Core fused kernel on lane-flattened activations: (N*H, W*Cin) -> (N*H, W*Cout)."""
    wci = x2d.shape[-1]
    wco = wb1.shape[-1]
    Nb = _pick_nb(N, H)
    grid = (N // Nb,)
    rows = Nb * H

    # Useful flops (structurally-zero band entries excluded); hint only.
    k1, k2 = wb1.shape[0], wb2.shape[0]
    flops = 2 * N * H * (k1 * wco + 2 * k2 * wco) * 3 // spatial_w
    bytes_accessed = (4 * x2d.size + 2 * (wb1.size + wb2.size + wb3.size)
                      + 4 * (b1t.size + b2t.size + b3t.size)
                      + 4 * N * H * wco)

    return pl.pallas_call(
        functools.partial(_fused_kernel, H=H),
        out_shape=jax.ShapeDtypeStruct((N * H, wco), x2d.dtype),
        grid=grid,
        in_specs=[
            pl.BlockSpec((rows, wci), lambda n: (n, 0)),
            pl.BlockSpec(wb1.shape, lambda n: (0, 0)),
            pl.BlockSpec(b1t.shape, lambda n: (0, 0)),
            pl.BlockSpec(wb2.shape, lambda n: (0, 0)),
            pl.BlockSpec(b2t.shape, lambda n: (0, 0)),
            pl.BlockSpec(wb3.shape, lambda n: (0, 0)),
            pl.BlockSpec(b3t.shape, lambda n: (0, 0)),
        ],
        out_specs=pl.BlockSpec((rows, wco), lambda n: (n, 0)),
        compiler_params=pltpu.CompilerParams(
            dimension_semantics=("parallel",)),
        cost_estimate=pl.CostEstimate(flops=flops, transcendentals=0,
                                      bytes_accessed=bytes_accessed),
    )(x2d, wb1, b1t, wb2, b2t, wb3, b3t)


@jax.jit
def _forward_nchw(x_nchw, wb1, b1t, wb2, b2t, wb3, b3t):
    # PyTorch-style NCHW interface.  The two transposes below exist only to
    # match the NCHW spec; a channels-last caller can use _forward_flat
    # directly and skip both HBM round-trips.
    N, Cin, H, W = x_nchw.shape
    wco = wb1.shape[-1]
    Cout = wco // W
    x2d = jnp.transpose(x_nchw, (0, 2, 3, 1)).reshape(N * H, W * Cin)
    out2d = _forward_flat(x2d, wb1, b1t, wb2, b2t, wb3, b3t,
                          N=N, H=H, spatial_w=W)
    return jnp.transpose(out2d.reshape(N, H, W, Cout), (0, 3, 1, 2))


class ResidualBlockPallas:
    """Mirrors nn.Sequential(Conv2d, Conv2d, Conv2d, ReLU) of the PyTorch module."""

    def __init__(self, in_channels, out_channels, key):
        ks = jax.random.split(key, 6)

        def conv_init(kw_key, kb_key, cin, cout):
            # PyTorch Conv2d default init: U(-s, s), s = 1/sqrt(cin*3*3)
            fan_in = cin * 3 * 3
            s = 1.0 / (fan_in ** 0.5)
            # PyTorch (Cout, Cin, 3, 3) -> HWIO (3, 3, Cin, Cout)
            w = jax.random.uniform(kw_key, (cout, cin, 3, 3), jnp.float32, -s, s)
            w = jnp.transpose(w, (2, 3, 1, 0))
            b = jax.random.uniform(kb_key, (cout,), jnp.float32, -s, s)
            return w, b

        self.w1, self.b1 = conv_init(ks[0], ks[1], in_channels, out_channels)
        self.w2, self.b2 = conv_init(ks[2], ks[3], out_channels, out_channels)
        self.w3, self.b3 = conv_init(ks[4], ks[5], out_channels, out_channels)
        self._packed_cache = {}   # banded bf16 weights / tiled biases, keyed by W

    def _packed(self, W):
        if W not in self._packed_cache:
            def pack(w, b):
                wb = _banded_weights(w, W).astype(jnp.bfloat16)
                bt = jnp.tile(b, W).reshape(1, -1).astype(jnp.float32)
                return wb, bt
            self._packed_cache[W] = (*pack(self.w1, self.b1),
                                     *pack(self.w2, self.b2),
                                     *pack(self.w3, self.b3))
        return self._packed_cache[W]

    def __call__(self, x_nchw):
        W = x_nchw.shape[-1]
        return _forward_nchw(x_nchw, *self._packed(W))


if __name__ == "__main__":
    key = jax.random.PRNGKey(0)
    k_x, k_p = jax.random.split(key)

    N, Cin, Cout, S = 4, 4, 8, 16
    x = jax.random.normal(k_x, (N, Cin, S, S), jnp.float32)   # NCHW like PyTorch

    block = ResidualBlockPallas(Cin, Cout, k_p)
    out = jax.block_until_ready(block(x))

    # Pure-JAX f32 reference (lax.conv) for correctness.
    def ref_conv(x_nchw, w_hwio, b, relu):
        w_oihw = jnp.transpose(w_hwio, (3, 2, 0, 1))
        y = jax.lax.conv_general_dilated(
            x_nchw, w_oihw, window_strides=(1, 1), padding=((1, 1), (1, 1)),
            dimension_numbers=("NCHW", "OIHW", "NCHW"))
        y = y + b.reshape(1, -1, 1, 1)
        return jnp.maximum(y, 0.0) if relu else y

    ref = ref_conv(x, block.w1, block.b1, False)
    ref = ref_conv(ref, block.w2, block.b2, False)
    ref = ref_conv(ref, block.w3, block.b3, True)

    assert out.shape == (N, Cout, S, S)
    err = float(jnp.max(jnp.abs(out - ref)))
    # bf16 matmul operands with f32 accumulation vs. a full-f32 reference.
    assert err < 1e-2, err
    print("KERNEL_OK")
</pallas_src>

<mosaic_0001>
module attributes {stable_mosaic.version = 11 : i64} {
  func.func @_fused_kernel(%arg0: i32, %arg1: memref<32x64xf32, #tpu.memory_space<vmem>>, %arg2: memref<192x128xbf16, #tpu.memory_space<vmem>>, %arg3: memref<1x128xf32, #tpu.memory_space<vmem>>, %arg4: memref<384x128xbf16, #tpu.memory_space<vmem>>, %arg5: memref<1x128xf32, #tpu.memory_space<vmem>>, %arg6: memref<384x128xbf16, #tpu.memory_space<vmem>>, %arg7: memref<1x128xf32, #tpu.memory_space<vmem>>, %arg8: memref<32x128xf32, #tpu.memory_space<vmem>>) attributes {dimension_semantics = [#tpu.dimension_semantics<parallel>], iteration_bounds = array<i64: 2>, scalar_prefetch = 0 : i64, scratch_operands = 0 : i64, tpu.core_type = #tpu.core_type<tc>, window_params = [{transform_indices = @transform_0, window_bounds = array<i64: 32, 64>}, {pipeline_mode = #tpu.pipeline_mode<synchronous>, transform_indices = @transform_1, window_bounds = array<i64: 192, 128>}, {pipeline_mode = #tpu.pipeline_mode<synchronous>, transform_indices = @transform_2, window_bounds = array<i64: 1, 128>}, {pipeline_mode = #tpu.pipeline_mode<synchronous>, transform_indices = @transform_3, window_bounds = array<i64: 384, 128>}, {pipeline_mode = #tpu.pipeline_mode<synchronous>, transform_indices = @transform_4, window_bounds = array<i64: 1, 128>}, {pipeline_mode = #tpu.pipeline_mode<synchronous>, transform_indices = @transform_5, window_bounds = array<i64: 384, 128>}, {pipeline_mode = #tpu.pipeline_mode<synchronous>, transform_indices = @transform_6, window_bounds = array<i64: 1, 128>}, {transform_indices = @transform_7, window_bounds = array<i64: 32, 128>}]} {
    %0 = tpu.iota {dimensions = array<i32: 0>} : vector<32x64xi32>
    %c16_i32 = arith.constant 16 : i32
    %c0_i32 = arith.constant 0 : i32
    %1 = arith.cmpi eq, %c16_i32, %c0_i32 : i32
    %c1_i32 = arith.constant 1 : i32
    %2 = arith.select %1, %c1_i32, %c16_i32 : i32
    %3 = vector.broadcast %2 : i32 to vector<32x64xi32>
    %4 = arith.remsi %0, %3 : vector<32x64xi32>
    %c0_i32_0 = arith.constant 0 : i32
    %5 = vector.broadcast %c0_i32_0 : i32 to vector<32x64xi32>
    %6 = arith.cmpi ne, %4, %5 : vector<32x64xi32>
    %c0_i32_1 = arith.constant 0 : i32
    %7 = vector.broadcast %c0_i32_1 : i32 to vector<32x64xi32>
    %8 = arith.cmpi slt, %4, %7 : vector<32x64xi32>
    %c0_i32_2 = arith.constant 0 : i32
    %9 = arith.cmpi slt, %2, %c0_i32_2 : i32
    %10 = vector.broadcast %9 : i1 to vector<32x64xi1>
    %11 = vector.broadcast %10 : vector<32x64xi1> to vector<32x64xi1>
    %12 = arith.xori %8, %11 : vector<32x64xi1>
    %13 = arith.andi %12, %6 : vector<32x64xi1>
    %14 = vector.broadcast %2 : i32 to vector<32x64xi32>
    %15 = arith.addi %4, %14 : vector<32x64xi32>
    %16 = arith.select %13, %15, %4 : vector<32x64xi1>, vector<32x64xi32>
    %c1_i32_3 = arith.constant 1 : i32
    %17 = vector.broadcast %c1_i32_3 : i32 to vector<32x64xi32>
    %18 = arith.cmpi sge, %16, %17 : vector<32x64xi32>
    %c15_i32 = arith.constant 15 : i32
    %19 = vector.broadcast %c15_i32 : i32 to vector<32x64xi32>
    %20 = arith.cmpi slt, %16, %19 : vector<32x64xi32>
    %cst = arith.constant 0.000000e+00 : f32
    %21 = vector.broadcast %cst : f32 to vector<32x64xf32>
    %22 = tpu.iota {dimensions = array<i32: 0>} : vector<32x128xi32>
    %c16_i32_4 = arith.constant 16 : i32
    %c0_i32_5 = arith.constant 0 : i32
    %23 = arith.cmpi eq, %c16_i32_4, %c0_i32_5 : i32
    %c1_i32_6 = arith.constant 1 : i32
    %24 = arith.select %23, %c1_i32_6, %c16_i32_4 : i32
    %25 = vector.broadcast %24 : i32 to vector<32x128xi32>
    %26 = arith.remsi %22, %25 : vector<32x128xi32>
    %c0_i32_7 = arith.constant 0 : i32
    %27 = vector.broadcast %c0_i32_7 : i32 to vector<32x128xi32>
    %28 = arith.cmpi ne, %26, %27 : vector<32x128xi32>
    %c0_i32_8 = arith.constant 0 : i32
    %29 = vector.broadcast %c0_i32_8 : i32 to vector<32x128xi32>
    %30 = arith.cmpi slt, %26, %29 : vector<32x128xi32>
    %c0_i32_9 = arith.constant 0 : i32
    %31 = arith.cmpi slt, %24, %c0_i32_9 : i32
    %32 = vector.broadcast %31 : i1 to vector<32x128xi1>
    %33 = vector.broadcast %32 : vector<32x128xi1> to vector<32x128xi1>
    %34 = arith.xori %30, %33 : vector<32x128xi1>
    %35 = arith.andi %34, %28 : vector<32x128xi1>
    %36 = vector.broadcast %24 : i32 to vector<32x128xi32>
    %37 = arith.addi %26, %36 : vector<32x128xi32>
    %38 = arith.select %35, %37, %26 : vector<32x128xi1>, vector<32x128xi32>
    %c1_i32_10 = arith.constant 1 : i32
    %39 = vector.broadcast %c1_i32_10 : i32 to vector<32x128xi32>
    %40 = arith.cmpi sge, %38, %39 : vector<32x128xi32>
    %c15_i32_11 = arith.constant 15 : i32
    %41 = vector.broadcast %c15_i32_11 : i32 to vector<32x128xi32>
    %42 = arith.cmpi slt, %38, %41 : vector<32x128xi32>
    %cst_12 = arith.constant 0.000000e+00 : f32
    %43 = vector.broadcast %cst_12 : f32 to vector<32x128xf32>
    %c0 = arith.constant 0 : index
    %c0_13 = arith.constant 0 : index
    %44 = vector.load %arg1[%c0, %c0_13] : memref<32x64xf32, #tpu.memory_space<vmem>>, vector<32x64xf32>
    %c1_i32_14 = arith.constant 1 : i32
    %45 = tpu.dynamic_rotate %44 by %c1_i32_14 dim 0 : vector<32x64xf32>, i32 -> vector<32x64xf32>
    %46 = arith.select %18, %45, %21 : vector<32x64xi1>, vector<32x64xf32>
    %c31_i32 = arith.constant 31 : i32
    %47 = tpu.dynamic_rotate %44 by %c31_i32 dim 0 : vector<32x64xf32>, i32 -> vector<32x64xf32>
    %48 = arith.select %20, %47, %21 : vector<32x64xi1>, vector<32x64xf32>
    %49 = tpu.concatenate %46, %44, %48 in 1 : vector<32x64xf32>, vector<32x64xf32>, vector<32x64xf32> -> vector<32x192xf32>
    %50 = arith.truncf %49 : vector<32x192xf32> to vector<32x192xbf16>
    %c0_15 = arith.constant 0 : index
    %c0_16 = arith.constant 0 : index
    %51 = vector.load %arg2[%c0_15, %c0_16] : memref<192x128xbf16, #tpu.memory_space<vmem>>, vector<192x128xbf16>
    %cst_17 = arith.constant dense<0.000000e+00> : vector<32x128xf32>
    %52 = tpu.matmul %50, %51, %cst_17 {dimension_numbers = #tpu.dot_dimension_numbers<[1], [0], [0], [1], [0, 0, 1, 1], [], []>} : vector<32x192xbf16>, vector<192x128xbf16>, vector<32x128xf32> -> vector<32x128xf32>
    %c0_18 = arith.constant 0 : index
    %c0_19 = arith.constant 0 : index
    %53 = vector.load %arg3[%c0_18, %c0_19] : memref<1x128xf32, #tpu.memory_space<vmem>>, vector<1x128xf32>
    %54 = vector.broadcast %53 : vector<1x128xf32> to vector<32x128xf32>
    %55 = arith.addf %52, %54 : vector<32x128xf32>
    %c1_i32_20 = arith.constant 1 : i32
    %56 = tpu.dynamic_rotate %55 by %c1_i32_20 dim 0 : vector<32x128xf32>, i32 -> vector<32x128xf32>
    %57 = arith.select %40, %56, %43 : vector<32x128xi1>, vector<32x128xf32>
    %c31_i32_21 = arith.constant 31 : i32
    %58 = tpu.dynamic_rotate %55 by %c31_i32_21 dim 0 : vector<32x128xf32>, i32 -> vector<32x128xf32>
    %59 = arith.select %42, %58, %43 : vector<32x128xi1>, vector<32x128xf32>
    %60 = tpu.concatenate %57, %55, %59 in 1 : vector<32x128xf32>, vector<32x128xf32>, vector<32x128xf32> -> vector<32x384xf32>
    %61 = arith.truncf %60 : vector<32x384xf32> to vector<32x384xbf16>
    %c0_22 = arith.constant 0 : index
    %c0_23 = arith.constant 0 : index
    %62 = vector.load %arg4[%c0_22, %c0_23] : memref<384x128xbf16, #tpu.memory_space<vmem>>, vector<384x128xbf16>
    %cst_24 = arith.constant dense<0.000000e+00> : vector<32x128xf32>
    %63 = tpu.matmul %61, %62, %cst_24 {dimension_numbers = #tpu.dot_dimension_numbers<[1], [0], [0], [1], [0, 0, 1, 1], [], []>} : vector<32x384xbf16>, vector<384x128xbf16>, vector<32x128xf32> -> vector<32x128xf32>
    %c0_25 = arith.constant 0 : index
    %c0_26 = arith.constant 0 : index
    %64 = vector.load %arg5[%c0_25, %c0_26] : memref<1x128xf32, #tpu.memory_space<vmem>>, vector<1x128xf32>
    %65 = vector.broadcast %64 : vector<1x128xf32> to vector<32x128xf32>
    %66 = arith.addf %63, %65 : vector<32x128xf32>
    %c1_i32_27 = arith.constant 1 : i32
    %67 = tpu.dynamic_rotate %66 by %c1_i32_27 dim 0 : vector<32x128xf32>, i32 -> vector<32x128xf32>
    %68 = arith.select %40, %67, %43 : vector<32x128xi1>, vector<32x128xf32>
    %c31_i32_28 = arith.constant 31 : i32
    %69 = tpu.dynamic_rotate %66 by %c31_i32_28 dim 0 : vector<32x128xf32>, i32 -> vector<32x128xf32>
    %70 = arith.select %42, %69, %43 : vector<32x128xi1>, vector<32x128xf32>
    %71 = tpu.concatenate %68, %66, %70 in 1 : vector<32x128xf32>, vector<32x128xf32>, vector<32x128xf32> -> vector<32x384xf32>
    %72 = arith.truncf %71 : vector<32x384xf32> to vector<32x384xbf16>
    %c0_29 = arith.constant 0 : index
    %c0_30 = arith.constant 0 : index
    %73 = vector.load %arg6[%c0_29, %c0_30] : memref<384x128xbf16, #tpu.memory_space<vmem>>, vector<384x128xbf16>
    %cst_31 = arith.constant dense<0.000000e+00> : vector<32x128xf32>
    %74 = tpu.matmul %72, %73, %cst_31 {dimension_numbers = #tpu.dot_dimension_numbers<[1], [0], [0], [1], [0, 0, 1, 1], [], []>} : vector<32x384xbf16>, vector<384x128xbf16>, vector<32x128xf32> -> vector<32x128xf32>
    %c0_32 = arith.constant 0 : index
    %c0_33 = arith.constant 0 : index
    %75 = vector.load %arg7[%c0_32, %c0_33] : memref<1x128xf32, #tpu.memory_space<vmem>>, vector<1x128xf32>
    %76 = vector.broadcast %75 : vector<1x128xf32> to vector<32x128xf32>
    %77 = arith.addf %74, %76 : vector<32x128xf32>
    %cst_34 = arith.constant 0.000000e+00 : f32
    %78 = vector.broadcast %cst_34 : f32 to vector<32x128xf32>
    %79 = arith.maximumf %77, %78 : vector<32x128xf32>
    %c0_35 = arith.constant 0 : index
    %c0_36 = arith.constant 0 : index
    %80 = vector.load %arg8[%c0_35, %c0_36] : memref<32x128xf32, #tpu.memory_space<vmem>>, vector<32x128xf32>
    tpu.vector_store %arg8[%c0_35, %c0_36], %79 {strides = array<i32>} : memref<32x128xf32, #tpu.memory_space<vmem>>, vector<32x128xf32>,
    return
  }
  func.func @transform_0(%arg0: i32) -> (i32, i32) {
    %c0_i32 = arith.constant 0 : i32
    %c0_i32_0 = arith.constant 0 : i32
    return %arg0, %c0_i32 : i32, i32
  }
  func.func @transform_1(%arg0: i32) -> (i32, i32) {
    %c0_i32 = arith.constant 0 : i32
    %c0_i32_0 = arith.constant 0 : i32
    %c0_i32_1 = arith.constant 0 : i32
    return %c0_i32, %c0_i32_0 : i32, i32
  }
  func.func @transform_2(%arg0: i32) -> (i32, i32) {
    %c0_i32 = arith.constant 0 : i32
    %c0_i32_0 = arith.constant 0 : i32
    %c0_i32_1 = arith.constant 0 : i32
    return %c0_i32, %c0_i32_0 : i32, i32
  }
  func.func @transform_3(%arg0: i32) -> (i32, i32) {
    %c0_i32 = arith.constant 0 : i32
    %c0_i32_0 = arith.constant 0 : i32
    %c0_i32_1 = arith.constant 0 : i32
    return %c0_i32, %c0_i32_0 : i32, i32
  }
  func.func @transform_4(%arg0: i32) -> (i32, i32) {
    %c0_i32 = arith.constant 0 : i32
    %c0_i32_0 = arith.constant 0 : i32
    %c0_i32_1 = arith.constant 0 : i32
    return %c0_i32, %c0_i32_0 : i32, i32
  }
  func.func @transform_5(%arg0: i32) -> (i32, i32) {
    %c0_i32 = arith.constant 0 : i32
    %c0_i32_0 = arith.constant 0 : i32
    %c0_i32_1 = arith.constant 0 : i32
    return %c0_i32, %c0_i32_0 : i32, i32
  }
  func.func @transform_6(%arg0: i32) -> (i32, i32) {
    %c0_i32 = arith.constant 0 : i32
    %c0_i32_0 = arith.constant 0 : i32
    %c0_i32_1 = arith.constant 0 : i32
    return %c0_i32, %c0_i32_0 : i32, i32
  }
  func.func @transform_7(%arg0: i32) -> (i32, i32) {
    %c0_i32 = arith.constant 0 : i32
    %c0_i32_0 = arith.constant 0 : i32
    return %arg0, %c0_i32 : i32, i32
  }
}

</mosaic_0001>

<llo_original>
// kernel: _forward_nchw.1
$region0: #{_forward_nchw.1}
  #allocation0 [shape = 'u32[]', space=smem, size = 0x4, offset = 0x4, fixed_abs, tag = 'smem constant byte address 0x4 - core index']
  #allocation1 [shape = 'u32[144,128]{1,0:T(1,128)}', space=vmem, size = 0x12000, scoped, tag = 'internal scratch']
  %s0 = inlined_call_operand.vmem [shape: f32[64,64], index: 0, kind: input, shape index: {}]
  %s1 = inlined_call_operand.vmem [shape: bf16[192,128], index: 1, kind: input, shape index: {}]
  %s2 = inlined_call_operand.vmem [shape: f32[1,128], index: 2, kind: input, shape index: {}]
  %s3 = inlined_call_operand.vmem [shape: bf16[384,128], index: 3, kind: input, shape index: {}]
  %s4 = inlined_call_operand.vmem [shape: f32[1,128], index: 4, kind: input, shape index: {}]
  %s5 = inlined_call_operand.vmem [shape: bf16[384,128], index: 5, kind: input, shape index: {}]
  %s6 = inlined_call_operand.vmem [shape: f32[1,128], index: 6, kind: input, shape index: {}]
  %s7 = inlined_call_operand.vmem [shape: f32[64,128], index: 7, kind: output, shape index: {}]
  %s8 = sld [smem:[#allocation0]]
  $region61: #{_forward_nchw.1} parent=0
    _
  %s10 = ssub.s32 1, %s8
  %s11 = scalar_select 0, %s10, %s8
  loop: start=0, step=1, limit=4
  $region2: #{_forward_nchw.1} parent=0 // loop_pre_header
    _
  $region3: #{_forward_nchw.1} parent=0 // loop_header
    %s13 = sphi 0, %s17
    %p14 = scmp.ge.s32.totalorder %s13, 4
    %s23 = sphi 0, %s25
    %s26 = sphi 0, %s23
    %s27 = sphi 0, %s26
    %s43 = sphi 0, %s27
    %s47 = sphi 0, %s47
    %s49 = sphi 0, %s47
    %s50 = sphi 0, %s49
    %s64 = sphi 0, %s50
    %s68 = sphi 0, %s68
    %s70 = sphi 0, %s68
    %s71 = sphi 0, %s70
    %s85 = sphi 0, %s71
    %s89 = sphi 0, %s89
    %s91 = sphi 0, %s89
    %s92 = sphi 0, %s91
    %s106 = sphi 0, %s92
    %s110 = sphi 0, %s110
    %s112 = sphi 0, %s110
    %s113 = sphi 0, %s112
    %s127 = sphi 0, %s113
    %s131 = sphi 0, %s131
    %s133 = sphi 0, %s131
    %s134 = sphi 0, %s133
    %s148 = sphi 0, %s134
    %s152 = sphi 0, %s152
    %s154 = sphi 0, %s152
    %s155 = sphi 0, %s154
    %s169 = sphi 0, %s155
    %s175 = sphi 0, %s177
    %s178 = sphi 0, %s175
    %s179 = sphi 0, %s178
    %s195 = sphi 0, %s179
  $region4: #{_forward_nchw.1} parent=0 // loop_header_branch
    %16 = sbr.rel (%p14) target = $region8
  $region5: #{_forward_nchw.1} parent=0 // loop_body
    %s18 = ssub.s32 %s13, 1
    %s19 = ssub.s32 %s13, 2
    %s20 = sadd.s32 %s13, 1
    %s21 = ssub.s32 %s13, %s20
    %p22 = scmp.eq.s32.totalorder %s21, 0
    %s24 = sadd.s32 %s23, 1
    %s25 = scalar_select %p22, %s23, %s24
    %p28 = pneg %p22
    %p29 = scmp.eq.s32.totalorder %s13, 1
    %p30 = por %p28, %p29
    %p31 = scmp.ne.s32.totalorder %s23, %s26
    %p32 = scmp.eq.s32.totalorder %s13, 0
    %p33 = por %p31, %p32
    %p34 = scmp.ne.s32.totalorder %s23, %s26
    %p35 = scmp.eq.s32.totalorder %s18, 1
    %p36 = por %p34, %p35
    %p37 = scmp.ne.s32.totalorder %s26, %s27
    %p38 = scmp.eq.s32.totalorder %s18, 0
    %p39 = por %p37, %p38
    %p40 = scmp.ne.s32.totalorder %s26, %s27
    %p41 = scmp.eq.s32.totalorder %s19, 1
    %p42 = por %p40, %p41
    %p44 = scmp.ne.s32.totalorder %s27, %s43
    %p45 = scmp.eq.s32.totalorder %s19, 0
    %p46 = por %p44, %p45
    %s48 = sadd.s32 %s47, 1
    %p51 = scmp.eq.s32.totalorder %s13, 1
    %p52 = scmp.ne.s32.totalorder %s47, %s49
    %p53 = scmp.eq.s32.totalorder %s13, 0
    %p54 = por %p52, %p53
    %p55 = scmp.ne.s32.totalorder %s47, %s49
    %p56 = scmp.eq.s32.totalorder %s18, 1
    %p57 = por %p55, %p56
    %p58 = scmp.ne.s32.totalorder %s49, %s50
    %p59 = scmp.eq.s32.totalorder %s18, 0
    %p60 = por %p58, %p59
    %p61 = scmp.ne.s32.totalorder %s49, %s50
    %p62 = scmp.eq.s32.totalorder %s19, 1
    %p63 = por %p61, %p62
    %p65 = scmp.ne.s32.totalorder %s50, %s64
    %p66 = scmp.eq.s32.totalorder %s19, 0
    %p67 = por %p65, %p66
    %s69 = sadd.s32 %s68, 1
    %p72 = scmp.eq.s32.totalorder %s13, 1
    %p73 = scmp.ne.s32.totalorder %s68, %s70
    %p74 = scmp.eq.s32.totalorder %s13, 0
    %p75 = por %p73, %p74
    %p76 = scmp.ne.s32.totalorder %s68, %s70
    %p77 = scmp.eq.s32.totalorder %s18, 1
    %p78 = por %p76, %p77
    %p79 = scmp.ne.s32.totalorder %s70, %s71
    %p80 = scmp.eq.s32.totalorder %s18, 0
    %p81 = por %p79, %p80
    %p82 = scmp.ne.s32.totalorder %s70, %s71
    %p83 = scmp.eq.s32.totalorder %s19, 1
    %p84 = por %p82, %p83
    %p86 = scmp.ne.s32.totalorder %s71, %s85
    %p87 = scmp.eq.s32.totalorder %s19, 0
    %p88 = por %p86, %p87
    %s90 = sadd.s32 %s89, 1
    %p93 = scmp.eq.s32.totalorder %s13, 1
    %p94 = scmp.ne.s32.totalorder %s89, %s91
    %p95 = scmp.eq.s32.totalorder %s13, 0
    %p96 = por %p94, %p95
    %p97 = scmp.ne.s32.totalorder %s89, %s91
    %p98 = scmp.eq.s32.totalorder %s18, 1
    %p99 = por %p97, %p98
    %p100 = scmp.ne.s32.totalorder %s91, %s92
    %p101 = scmp.eq.s32.totalorder %s18, 0
    %p102 = por %p100, %p101
    %p103 = scmp.ne.s32.totalorder %s91, %s92
    %p104 = scmp.eq.s32.totalorder %s19, 1
    %p105 = por %p103, %p104
    %p107 = scmp.ne.s32.totalorder %s92, %s106
    %p108 = scmp.eq.s32.totalorder %s19, 0
    %p109 = por %p107, %p108
    %s111 = sadd.s32 %s110, 1
    %p114 = scmp.eq.s32.totalorder %s13, 1
    %p115 = scmp.ne.s32.totalorder %s110, %s112
    %p116 = scmp.eq.s32.totalorder %s13, 0
    %p117 = por %p115, %p116
    %p118 = scmp.ne.s32.totalorder %s110, %s112
    %p119 = scmp.eq.s32.totalorder %s18, 1
    %p120 = por %p118, %p119
    %p121 = scmp.ne.s32.totalorder %s112, %s113
    %p122 = scmp.eq.s32.totalorder %s18, 0
    %p123 = por %p121, %p122
    %p124 = scmp.ne.s32.totalorder %s112, %s113
    %p125 = scmp.eq.s32.totalorder %s19, 1
    %p126 = por %p124, %p125
    %p128 = scmp.ne.s32.totalorder %s113, %s127
    %p129 = scmp.eq.s32.totalorder %s19, 0
    %p130 = por %p128, %p129
    %s132 = sadd.s32 %s131, 1
    %p135 = scmp.eq.s32.totalorder %s13, 1
    %p136 = scmp.ne.s32.totalorder %s131, %s133
    %p137 = scmp.eq.s32.totalorder %s13, 0
    %p138 = por %p136, %p137
    %p139 = scmp.ne.s32.totalorder %s131, %s133
    %p140 = scmp.eq.s32.totalorder %s18, 1
    %p141 = por %p139, %p140
    %p142 = scmp.ne.s32.totalorder %s133, %s134
    %p143 = scmp.eq.s32.totalorder %s18, 0
    %p144 = por %p142, %p143
    %p145 = scmp.ne.s32.totalorder %s133, %s134
    %p146 = scmp.eq.s32.totalorder %s19, 1
    %p147 = por %p145, %p146
    %p149 = scmp.ne.s32.totalorder %s134, %s148
    %p150 = scmp.eq.s32.totalorder %s19, 0
    %p151 = por %p149, %p150
    %s153 = sadd.s32 %s152, 1
    %p156 = scmp.eq.s32.totalorder %s13, 1
    %p157 = scmp.ne.s32.totalorder %s152, %s154
    %p158 = scmp.eq.s32.totalorder %s13, 0
    %p159 = por %p157, %p158
    %p160 = scmp.ne.s32.totalorder %s152, %s154
    %p161 = scmp.eq.s32.totalorder %s18, 1
    %p162 = por %p160, %p161
    %p163 = scmp.ne.s32.totalorder %s154, %s155
    %p164 = scmp.eq.s32.totalorder %s18, 0
    %p165 = por %p163, %p164
    %p166 = scmp.ne.s32.totalorder %s154, %s155
    %p167 = scmp.eq.s32.totalorder %s19, 1
    %p168 = por %p166, %p167
    %p170 = scmp.ne.s32.totalorder %s155, %s169
    %p171 = scmp.eq.s32.totalorder %s19, 0
    %p172 = por %p170, %p171
    %s173 = ssub.s32 %s13, %s20
    %p174 = scmp.eq.s32.totalorder %s173, 0
    %s176 = sadd.s32 %s175, 1
    %s177 = scalar_select %p174, %s175, %s176
    %p180 = pneg %p174
    %p181 = scmp.eq.s32.totalorder %s13, 1
    %p182 = por %p180, %p181
    %p183 = scmp.ne.s32.totalorder %s175, %s178
    %p184 = scmp.eq.s32.totalorder %s13, 0
    %p185 = por %p183, %p184
    %p186 = scmp.ne.s32.totalorder %s175, %s178
    %p187 = scmp.eq.s32.totalorder %s18, 1
    %p188 = por %p186, %p187
    %p189 = scmp.ne.s32.totalorder %s178, %s179
    %p190 = scmp.eq.s32.totalorder %s18, 0
    %p191 = por %p189, %p190
    %p192 = scmp.ne.s32.totalorder %s178, %s179
    %p193 = scmp.eq.s32.totalorder %s19, 1
    %p194 = por %p192, %p193
    %p196 = scmp.ne.s32.totalorder %s179, %s195
    %p197 = scmp.eq.s32.totalorder %s19, 0
    %p198 = por %p196, %p197
    %p199 = scmp.le.s32.totalorder 1, %s13
    %p200 = scmp.lt.s32.totalorder %s13, 3
    %p201 = pnand %p199, %p200
    %p202 = pneg %p201
    // Predicated region
    $region9: #{_forward_nchw.1} parent=5 // pred_check
      _
    $region10: #{_forward_nchw.1} parent=5 // pred_check_branch
      %204 = sbr.rel (%p201) target = $region12
    $region11: #{_forward_nchw.1} parent=5 // pred_region
      %s205 = ssub.s32 %s13, 1
      // Predicated region
      $region13: #{_forward_nchw.1} parent=11 // pred_check
        %p206 = pneg %p60
      $region14: #{_forward_nchw.1} parent=11 // pred_check_branch
        %208 = sbr.rel (%p206) target = $region16
      $region15: #{_forward_nchw.1} parent=11 // pred_region
        _
      $region16: #{_forward_nchw.1} parent=11 // pred_fallthru
        _
      // Predicated region
      $region17: #{_forward_nchw.1} parent=11 // pred_check
        %p209 = pneg %p81
      $region18: #{_forward_nchw.1} parent=11 // pred_check_branch
        %211 = sbr.rel (%p209) target = $region20
      $region19: #{_forward_nchw.1} parent=11 // pred_region
        _
      $region20: #{_forward_nchw.1} parent=11 // pred_fallthru
        _
      // Predicated region
      $region21: #{_forward_nchw.1} parent=11 // pred_check
        %p212 = pneg %p102
      $region22: #{_forward_nchw.1} parent=11 // pred_check_branch
        %214 = sbr.rel (%p212) target = $region24
      $region23: #{_forward_nchw.1} parent=11 // pred_region
        _
      $region24: #{_forward_nchw.1} parent=11 // pred_fallthru
        _
      // Predicated region
      $region25: #{_forward_nchw.1} parent=11 // pred_check
        %p215 = pneg %p123
      $region26: #{_forward_nchw.1} parent=11 // pred_check_branch
        %217 = sbr.rel (%p215) target = $region28
      $region27: #{_forward_nchw.1} parent=11 // pred_region
        _
      $region28: #{_forward_nchw.1} parent=11 // pred_fallthru
        _
      // Predicated region
      $region29: #{_forward_nchw.1} parent=11 // pred_check
        %p218 = pneg %p144
      $region30: #{_forward_nchw.1} parent=11 // pred_check_branch
        %220 = sbr.rel (%p218) target = $region32
      $region31: #{_forward_nchw.1} parent=11 // pred_region
        _
      $region32: #{_forward_nchw.1} parent=11 // pred_fallthru
        _
      // Predicated region
      $region33: #{_forward_nchw.1} parent=11 // pred_check
        %p221 = pneg %p165
      $region34: #{_forward_nchw.1} parent=11 // pred_check_branch
        %223 = sbr.rel (%p221) target = $region36
      $region35: #{_forward_nchw.1} parent=11 // pred_region
        _
      $region36: #{_forward_nchw.1} parent=11 // pred_fallthru
        _
    $region12: #{_forward_nchw.1} parent=5 // pred_fallthru
      _
    %p224 = scmp.lt.s32.totalorder %s13, 2
    // Predicated region
    $region37: #{_forward_nchw.1} parent=5 // pred_check
      %p225 = pneg %p224
    $region38: #{_forward_nchw.1} parent=5 // pred_check_branch
      %227 = sbr.rel (%p225) target = $region40
    $region39: #{_forward_nchw.1} parent=5 // pred_region
      // Predicated region
      $region41: #{_forward_nchw.1} parent=39 // pred_check
        %p228 = pneg %p33
      $region42: #{_forward_nchw.1} parent=39 // pred_check_branch
        %230 = sbr.rel (%p228) target = $region44
      $region43: #{_forward_nchw.1} parent=39 // pred_region
        %s231 = smul.u32 4, %s13
        %p232 = scmp.lt.s32.totalorder %s231, 7
        %s233 = scalar_select %p232, %s231, 7
        %s234 = smul.addr %s233, 8
        %s235 = scalar_lea.vmem %s0, %s234
        %s236 = smul.u32 4, %s13
      $region44: #{_forward_nchw.1} parent=39 // pred_fallthru
        _
    $region40: #{_forward_nchw.1} parent=5 // pred_fallthru
      _
    %p237 = scmp.le.s32.totalorder 1, %s13
    %p238 = scmp.lt.s32.totalorder %s13, 3
    %p239 = pnand %p237, %p238
    %p240 = pneg %p239
    // Predicated region
    $region45: #{_forward_nchw.1} parent=5 // pred_check
      _
    $region46: #{_forward_nchw.1} parent=5 // pred_check_branch
      %242 = sbr.rel (%p239) target = $region48
    $region47: #{_forward_nchw.1} parent=5 // pred_region
      %s243 = ssub.s32 %s13, 1
      %s244 = smul.u32 4, %s18
      %p245 = scmp.lt.s32.totalorder %s244, 7
      %s246 = scalar_select %p245, %s244, 7
      %s247 = smul.addr %s246, 8
      %s248 = scalar_lea.vmem %s0, %s247
      %p249 = pneg %p39
      %p250 = pneg %p36
      %p251 = pneg %p60
      %p252 = pneg %p57
      %p253 = pneg %p81
      %p254 = pneg %p78
      %p255 = pneg %p102
      %p256 = pneg %p99
      %p257 = pneg %p123
      %p258 = pneg %p120
      %p259 = pneg %p144
      %p260 = pneg %p141
      %p261 = pneg %p165
      %p262 = pneg %p162
      %p263 = pneg %p191
      %p264 = pneg %p188
      %s265 = smul.u32 4, %s18
      %p266 = scmp.lt.s32.totalorder %s265, 7
      %s267 = scalar_select %p266, %s265, 7
      %s268 = smul.addr %s267, 8
      %s269 = scalar_lea.vmem %s7, %s268
      %s270 = smul.u32 4, %s18
      %p271 = scmp.lt.s32.totalorder %s270, 7
      %s272 = scalar_select %p271, %s270, 7
      %s273 = smul.addr %s272, 8
      %s274 = scalar_lea.vmem %s0, %s273
      %s275 = smul.u32 4, %s18
      %s276 = smul.u32 4, %s18
      %p277 = scmp.lt.s32.totalorder %s276, 7
      %s278 = scalar_select %p277, %s276, 7
      %s279 = smul.addr %s278, 8
      %s280 = scalar_lea.vmem %s7, %s279
      %s281 = smul.u32 4, %s18
      %v283 = vlaneseq
      %v284 = vshrl.u32 %v283, 7
      %v285 = vadd.s32 %v284, 8
      %v286 = vadd.s32 %v284, 16
      %v287 = vadd.s32 %v284, 24
      %vm288 = vcmp.lt.s32.totalorder %v284, 0
      %v289 = vsub.s32 0, %v284
      %v290 = vsel %vm288, %v289, %v284
      %v291 = vshrl.u32 %v290, 4
      %v292 = vand.u32 %v290, 15
      %v293 = vsub.s32 0, %v292
      %v294 = vsel %vm288, %v293, %v292
      %vm295 = vcmp.lt.s32.totalorder %v285, 0
      %v296 = vsub.s32 0, %v285
      %v297 = vsel %vm295, %v296, %v285
      %v298 = vshrl.u32 %v297, 4
      %v299 = vand.u32 %v297, 15
      %v300 = vsub.s32 0, %v299
      %v301 = vsel %vm295, %v300, %v299
      %vm302 = vcmp.lt.s32.totalorder %v286, 0
      %v303 = vsub.s32 0, %v286
      %v304 = vsel %vm302, %v303, %v286
      %v305 = vshrl.u32 %v304, 4
      %v306 = vand.u32 %v304, 15
      %v307 = vsub.s32 0, %v306
      %v308 = vsel %vm302, %v307, %v306
      %vm309 = vcmp.lt.s32.totalorder %v287, 0
      %v310 = vsub.s32 0, %v287
      %v311 = vsel %vm309, %v310, %v287
      %v312 = vshrl.u32 %v311, 4
      %v313 = vand.u32 %v311, 15
      %v314 = vsub.s32 0, %v313
      %v315 = vsel %vm309, %v314, %v313
      %vm316 = vcmp.ne.s32.totalorder %v294, 0
      %vm317 = vcmp.ne.s32.totalorder %v301, 0
      %vm318 = vcmp.ne.s32.totalorder %v308, 0
      %vm319 = vcmp.ne.s32.totalorder %v315, 0
      %vm320 = vcmp.lt.s32.totalorder %v294, 0
      %vm321 = vcmp.lt.s32.totalorder %v301, 0
      %vm322 = vcmp.lt.s32.totalorder %v308, 0
      %vm323 = vcmp.lt.s32.totalorder %v315, 0
      %vm324 = vmand %vm320, %vm316
      %vm325 = vmand %vm321, %vm317
      %vm326 = vmand %vm322, %vm318
      %vm327 = vmand %vm323, %vm319
      %v328 = vadd.s32 %v294, 16
      %v329 = vadd.s32 %v301, 16
      %v330 = vadd.s32 %v308, 16
      %v331 = vadd.s32 %v315, 16
      %v332 = vsel %vm324, %v328, %v294
      %v333 = vsel %vm325, %v329, %v301
      %v334 = vsel %vm326, %v330, %v308
      %v335 = vsel %vm327, %v331, %v315
      %vm336 = vcmp.ge.s32.totalorder %v332, 1
      %vm337 = vcmp.ge.s32.totalorder %v333, 1
      %vm338 = vcmp.ge.s32.totalorder %v334, 1
      %vm339 = vcmp.ge.s32.totalorder %v335, 1
      %vm340 = vcmp.lt.s32.totalorder %v332, 15
      %vm341 = vcmp.lt.s32.totalorder %v333, 15
      %vm342 = vcmp.lt.s32.totalorder %v334, 15
      %vm343 = vcmp.lt.s32.totalorder %v335, 15
      %v344 = vld [vmem:[%s274] sm:$0xff]
      %v345 = vld [vmem:[%s274 + $0x8] sm:$0xff]
      %v346 = vld [vmem:[%s274 + $0x10] sm:$0xff]
      %v347 = vld [vmem:[%s274 + $0x18] sm:$0xff]
      %v348 = vrot.slane %v344, 7
      %v349 = vrot.slane %v345, 7
      %v350 = vrot.slane %v346, 7
      %v351 = vrot.slane %v347, 7
      %vm352 = vcmp.lt.s32.totalorder %v284, 1
      %v353 = vsel %vm352, %v350, %v351
      %v354 = vsel %vm352, %v349, %v350
      %v355 = vsel %vm352, %v348, %v349
      %v356 = vsel %vm352, %v351, %v348
      %v357 = vsel %vm336, %v356, 0.0
      %v358 = vsel %vm337, %v355, 0.0
      %v359 = vsel %vm338, %v354, 0.0
      %v360 = vsel %vm339, %v353, 0.0
      %v361 = vrot.slane %v344, 1
      %v362 = vrot.slane %v345, 1
      %v363 = vrot.slane %v346, 1
      %v364 = vrot.slane %v347, 1
      %vm365 = vcmp.lt.s32.totalorder %v284, 7
      %v366 = vsel %vm365, %v363, %v364
      %v367 = vsel %vm365, %v362, %v363
      %v368 = vsel %vm365, %v361, %v362
      %v369 = vsel %vm365, %v364, %v361
      %v370 = vsel %vm340, %v368, 0.0
      %v371 = vsel %vm341, %v367, 0.0
      %v372 = vsel %vm342, %v366, 0.0
      %v373 = vsel %vm343, %v369, 0.0
      %378 = vrot.lane.b32.xlu0 %v344, 64
      %v379 = vpop.permute.xlu0 %378
      %380 = vrot.lane.b32.xlu0 %v345, 64
      %v381 = vpop.permute.xlu0 %380
      %382 = vrot.lane.b32.xlu0 %v346, 64
      %v383 = vpop.permute.xlu0 %382
      %384 = vrot.lane.b32.xlu0 %v347, 64
      %v385 = vpop.permute.xlu0 %384
      %vm390 = vcmask 523264
      %v391 = vsel %vm390, %v357, %v379
      %v392 = vsel %vm390, %v358, %v381
      %v393 = vsel %vm390, %v359, %v383
      %v394 = vsel %vm390, %v360, %v385
      %v395 = vpack.c.bf16 %v392, %v391
      %v396 = vpack.c.bf16 %v371, %v370
      %v397 = vpack.c.bf16 %v394, %v393
      %v398 = vpack.c.bf16 %v373, %v372
      %v399 = vld [vmem:[%s1] sm:$0xf]
      %v400 = vld [vmem:[%s1 + $0x4] sm:$0xf]
      %v401 = vld [vmem:[%s1 + $0x8] sm:$0xf]
      %v402 = vld [vmem:[%s1 + $0xc] sm:$0xf]
      %v403 = vld [vmem:[%s1 + $0x10] sm:$0xf]
      %v404 = vld [vmem:[%s1 + $0x14] sm:$0xf]
      %v405 = vld [vmem:[%s1 + $0x18] sm:$0xf]
      %v406 = vld [vmem:[%s1 + $0x1c] sm:$0xf]
      %v407 = vld [vmem:[%s1 + $0x20] sm:$0xf]
      %v408 = vld [vmem:[%s1 + $0x24] sm:$0xf]
      %v409 = vld [vmem:[%s1 + $0x28] sm:$0xf]
      %v410 = vld [vmem:[%s1 + $0x2c] sm:$0xf]
      %v411 = vld [vmem:[%s1 + $0x30] sm:$0xf]
      %v412 = vld [vmem:[%s1 + $0x34] sm:$0xf]
      %v413 = vld [vmem:[%s1 + $0x38] sm:$0xf]
      %v414 = vld [vmem:[%s1 + $0x3c] sm:$0xf]
      %v415 = vld [vmem:[%s1 + $0x40] sm:$0xf]
      %v416 = vld [vmem:[%s1 + $0x44] sm:$0xf]
      %v417 = vld [vmem:[%s1 + $0x48] sm:$0xf]
      %v418 = vld [vmem:[%s1 + $0x4c] sm:$0xf]
      %v419 = vld [vmem:[%s1 + $0x50] sm:$0xf]
      %v420 = vld [vmem:[%s1 + $0x54] sm:$0xf]
      %v421 = vld [vmem:[%s1 + $0x58] sm:$0xf]
      %v422 = vld [vmem:[%s1 + $0x5c] sm:$0xf]
      %v423 = vld [vmem:[%s2] sm:$0x1]
      %v425 = vlaneseq
      %v426 = vshrl.u32 %v425, 7
      %v427 = vsub.s32 0, %v426
      %v428 = vrot.slane %v423, %v427
      %v454 = vunpack.c.l.b16 %v399
      %v455 = vunpack.c.l.b16 %v400
      %v456 = vunpack.c.l.b16 %v401
      %v457 = vunpack.c.l.b16 %v402
      %v458 = vunpack.c.l.b16 %v403
      %v459 = vunpack.c.l.b16 %v404
      %v460 = vunpack.c.l.b16 %v405
      %v461 = vunpack.c.l.b16 %v406
      %v462 = vunpack.c.l.b16 %v407
      %v463 = vunpack.c.l.b16 %v408
      %v464 = vunpack.c.l.b16 %v409
      %v465 = vunpack.c.l.b16 %v410
      %v466 = vunpack.c.l.b16 %v411
      %v467 = vunpack.c.l.b16 %v412
      %v468 = vunpack.c.l.b16 %v413
      %v469 = vunpack.c.l.b16 %v414
      %v470 = vunpack.c.l.b16 %v415
      %v471 = vunpack.c.l.b16 %v416
      %v472 = vunpack.c.l.b16 %v417
      %v473 = vunpack.c.l.b16 %v418
      %v474 = vunpack.c.l.b16 %v419
      %v475 = vunpack.c.l.b16 %v420
      %v476 = vunpack.c.l.b16 %v421
      %v477 = vunpack.c.l.b16 %v422
      %v478 = vpack.c.b16 %v455, %v454
      %v479 = vpack.c.b16 %v457, %v456
      %v480 = vpack.c.b16 %v459, %v458
      %v481 = vpack.c.b16 %v461, %v460
      %v482 = vpack.c.b16 %v463, %v462
      %v483 = vpack.c.b16 %v465, %v464
      %v484 = vpack.c.b16 %v467, %v466
      %v485 = vpack.c.b16 %v469, %v468
      %v486 = vpack.c.b16 %v471, %v470
      %v487 = vpack.c.b16 %v473, %v472
      %v488 = vpack.c.b16 %v475, %v474
      %v489 = vpack.c.b16 %v477, %v476
      %v503 = vsel %vm390, %v396, 0
      %v506 = vsel %vm390, %v398, 0
      %508 = vmatprep.subr.bf16.mxu0 0
      %509 = vmatpush1.bf16.msra.mxu0 %v478
      %510 = vmatprep.subr.bf16.mxu0 0
      %511 = vmatpush1.bf16.msra.mxu0 %v479
      %512 = vmatprep.subr.bf16.mxu0 0
      %513 = vmatpush1.bf16.msra.mxu0 %v480
      %514 = vmatprep.subr.bf16.mxu0 0
      %515 = vmatpush1.bf16.msra.mxu0 %v481
      %516 = vmatprep.subr.bf16.mxu0 0
      %517 = vmatpush1.bf16.msra.mxu0 %v482
      %518 = vmatprep.subr.bf16.mxu0 0
      %519 = vmatpush1.bf16.msra.mxu0 %v483
      %520 = vmatprep.subr.bf16.mxu0 0
      %521 = vmatpush1.bf16.msra.mxu0 %v484
      %522 = vmatprep.subr.bf16.mxu0 0
      %523 = vmatpush1.bf16.msra.mxu0 %v485
      %524 = vmatprep.subr.bf16.mxu0 0
      %525 = vmatpush1.bf16.msra.mxu0 %v486
      %526 = vmatprep.subr.bf16.mxu0 0
      %527 = vmatpush1.bf16.msra.mxu0 %v487
      %528 = vmatprep.subr.bf16.mxu0 0
      %529 = vmatpush1.bf16.msra.mxu0 %v488
      %530 = vmatprep.subr.bf16.mxu0 0
      %531 = vmatpush1.bf16.msra.mxu0 %v489
      %532 = vmatprep.subr.bf16.mxu0 0
      %533 = vmatpush1.bf16.msra.mxu0 0
      %534 = vmatprep.subr.bf16.mxu0 0
      %535 = vmatpush1.bf16.msra.mxu0 0
      %536 = vmatprep.subr.bf16.mxu0 0
      %537 = vmatpush1.bf16.msra.mxu0 0
      %538 = vmatprep.subr.bf16.mxu0 0
      %539 = vmatpush1.bf16.msra.mxu0 0
      %540 = vmatprep.mubr.bf16.mxu0 %v503
      %541 = vmatmul.mubr.bf16.gmra.mrb[0].mxu0 %v395
      %v542 = vpop.f32.mrb[0].mxu0
      %v543 = vadd.f32 %v428, %v542
      %v544 = vpop.f32.mrb[0].mxu0
      %v545 = vpop.f32.mrb[0].mxu0
      %v546 = vadd.f32 %v428, %v545
      %v547 = vpop.f32.mrb[0].mxu0
      %548 = vmatprep.mubr.bf16.mxu0 %v506
      %549 = vmatmul.mubr.bf16.gmra.mrb[0].mxu0 %v397
      %v550 = vpop.f32.mrb[0].mxu0
      %v551 = vadd.f32 %v428, %v550
      %v552 = vpop.f32.mrb[0].mxu0
      %v553 = vpop.f32.mrb[0].mxu0
      %v554 = vadd.f32 %v428, %v553
      %v555 = vpop.f32.mrb[0].mxu0
      %556 = vdwg.mxu0
      %v557 = vrot.slane %v543, 7
      %v558 = vrot.slane %v546, 7
      %v559 = vrot.slane %v551, 7
      %v560 = vrot.slane %v554, 7
      %v561 = vsel %vm352, %v559, %v560
      %v562 = vsel %vm352, %v558, %v559
      %v563 = vsel %vm352, %v557, %v558
      %v564 = vsel %vm352, %v560, %v557
      %v565 = vsel %vm336, %v564, 0.0
      %v566 = vsel %vm337, %v563, 0.0
      %v567 = vsel %vm338, %v562, 0.0
      %v568 = vsel %vm339, %v561, 0.0
      %v569 = vrot.slane %v543, 1
      %v570 = vrot.slane %v546, 1
      %v571 = vrot.slane %v551, 1
      %v572 = vrot.slane %v554, 1
      %v573 = vsel %vm365, %v571, %v572
      %v574 = vsel %vm365, %v570, %v571
      %v575 = vsel %vm365, %v569, %v570
      %v576 = vsel %vm365, %v572, %v569
      %v577 = vsel %vm340, %v575, 0.0
      %v578 = vsel %vm341, %v574, 0.0
      %v579 = vsel %vm342, %v573, 0.0
      %v580 = vsel %vm343, %v576, 0.0
      %v581 = vpack.c.bf16 %v566, %v565
      %v582 = vpack.c.bf16 %v546, %v543
      %v583 = vpack.c.bf16 %v578, %v577
      %v584 = vpack.c.bf16 %v568, %v567
      %v585 = vpack.c.bf16 %v554, %v551
      %v586 = vpack.c.bf16 %v580, %v579
      %v587 = vld [vmem:[%s3] sm:$0xf]
      %v588 = vld [vmem:[%s3 + $0x4] sm:$0xf]
      %v589 = vld [vmem:[%s3 + $0x8] sm:$0xf]
      %v590 = vld [vmem:[%s3 + $0xc] sm:$0xf]
      %v591 = vld [vmem:[%s3 + $0x10] sm:$0xf]
      %v592 = vld [vmem:[%s3 + $0x14] sm:$0xf]
      %v593 = vld [vmem:[%s3 + $0x18] sm:$0xf]
      %v594 = vld [vmem:[%s3 + $0x1c] sm:$0xf]
      %v595 = vld [vmem:[%s3 + $0x20] sm:$0xf]
      %v596 = vld [vmem:[%s3 + $0x24] sm:$0xf]
      %v597 = vld [vmem:[%s3 + $0x28] sm:$0xf]
      %v598 = vld [vmem:[%s3 + $0x2c] sm:$0xf]
      %v599 = vld [vmem:[%s3 + $0x30] sm:$0xf]
      %v600 = vld [vmem:[%s3 + $0x34] sm:$0xf]
      %v601 = vld [vmem:[%s3 + $0x38] sm:$0xf]
      %v602 = vld [vmem:[%s3 + $0x3c] sm:$0xf]
      %v603 = vld [vmem:[%s3 + $0x40] sm:$0xf]
      %v604 = vld [vmem:[%s3 + $0x44] sm:$0xf]
      %v605 = vld [vmem:[%s3 + $0x48] sm:$0xf]
      %v606 = vld [vmem:[%s3 + $0x4c] sm:$0xf]
      %v607 = vld [vmem:[%s3 + $0x50] sm:$0xf]
      %v608 = vld [vmem:[%s3 + $0x54] sm:$0xf]
      %v609 = vld [vmem:[%s3 + $0x58] sm:$0xf]
      %v610 = vld [vmem:[%s3 + $0x5c] sm:$0xf]
      %v611 = vld [vmem:[%s3 + $0x60] sm:$0xf]
      %v612 = vld [vmem:[%s3 + $0x64] sm:$0xf]
      %v613 = vld [vmem:[%s3 + $0x68] sm:$0xf]
      %v614 = vld [vmem:[%s3 + $0x6c] sm:$0xf]
      %v615 = vld [vmem:[%s3 + $0x70] sm:$0xf]
      %v616 = vld [vmem:[%s3 + $0x74] sm:$0xf]
      %v617 = vld [vmem:[%s3 + $0x78] sm:$0xf]
      %v618 = vld [vmem:[%s3 + $0x7c] sm:$0xf]
      %v619 = vld [vmem:[%s3 + $0x80] sm:$0xf]
      %v620 = vld [vmem:[%s3 + $0x84] sm:$0xf]
      %v621 = vld [vmem:[%s3 + $0x88] sm:$0xf]
      %v622 = vld [vmem:[%s3 + $0x8c] sm:$0xf]
      %v623 = vld [vmem:[%s3 + $0x90] sm:$0xf]
      %v624 = vld [vmem:[%s3 + $0x94] sm:$0xf]
      %v625 = vld [vmem:[%s3 + $0x98] sm:$0xf]
      %v626 = vld [vmem:[%s3 + $0x9c] sm:$0xf]
      %v627 = vld [vmem:[%s3 + $0xa0] sm:$0xf]
      %v628 = vld [vmem:[%s3 + $0xa4] sm:$0xf]
      %v629 = vld [vmem:[%s3 + $0xa8] sm:$0xf]
      %v630 = vld [vmem:[%s3 + $0xac] sm:$0xf]
      %v631 = vld [vmem:[%s3 + $0xb0] sm:$0xf]
      %v632 = vld [vmem:[%s3 + $0xb4] sm:$0xf]
      %v633 = vld [vmem:[%s3 + $0xb8] sm:$0xf]
      %v634 = vld [vmem:[%s3 + $0xbc] sm:$0xf]
      %v635 = vld [vmem:[%s4] sm:$0x1]
      %v637 = vlaneseq
      %v638 = vshrl.u32 %v637, 7
      %v639 = vsub.s32 0, %v638
      %v640 = vrot.slane %v635, %v639
      %v690 = vunpack.c.l.b16 %v587
      %v691 = vunpack.c.l.b16 %v588
      %v692 = vunpack.c.l.b16 %v589
      %v693 = vunpack.c.l.b16 %v590
      %v694 = vunpack.c.l.b16 %v591
      %v695 = vunpack.c.l.b16 %v592
      %v696 = vunpack.c.l.b16 %v593
      %v697 = vunpack.c.l.b16 %v594
      %v698 = vunpack.c.l.b16 %v595
      %v699 = vunpack.c.l.b16 %v596
      %v700 = vunpack.c.l.b16 %v597
      %v701 = vunpack.c.l.b16 %v598
      %v702 = vunpack.c.l.b16 %v599
      %v703 = vunpack.c.l.b16 %v600
      %v704 = vunpack.c.l.b16 %v601
      %v705 = vunpack.c.l.b16 %v602
      %v706 = vunpack.c.l.b16 %v603
      %v707 = vunpack.c.l.b16 %v604
      %v708 = vunpack.c.l.b16 %v605
      %v709 = vunpack.c.l.b16 %v606
      %v710 = vunpack.c.l.b16 %v607
      %v711 = vunpack.c.l.b16 %v608
      %v712 = vunpack.c.l.b16 %v609
      %v713 = vunpack.c.l.b16 %v610
      %v714 = vunpack.c.l.b16 %v611
      %v715 = vunpack.c.l.b16 %v612
      %v716 = vunpack.c.l.b16 %v613
      %v717 = vunpack.c.l.b16 %v614
      %v718 = vunpack.c.l.b16 %v615
      %v719 = vunpack.c.l.b16 %v616
      %v720 = vunpack.c.l.b16 %v617
      %v721 = vunpack.c.l.b16 %v618
      %v722 = vunpack.c.l.b16 %v619
      %v723 = vunpack.c.l.b16 %v620
      %v724 = vunpack.c.l.b16 %v621
      %v725 = vunpack.c.l.b16 %v622
      %v726 = vunpack.c.l.b16 %v623
      %v727 = vunpack.c.l.b16 %v624
      %v728 = vunpack.c.l.b16 %v625
      %v729 = vunpack.c.l.b16 %v626
      %v730 = vunpack.c.l.b16 %v627
      %v731 = vunpack.c.l.b16 %v628
      %v732 = vunpack.c.l.b16 %v629
      %v733 = vunpack.c.l.b16 %v630
      %v734 = vunpack.c.l.b16 %v631
      %v735 = vunpack.c.l.b16 %v632
      %v736 = vunpack.c.l.b16 %v633
      %v737 = vunpack.c.l.b16 %v634
      %v738 = vpack.c.b16 %v691, %v690
      %v739 = vpack.c.b16 %v693, %v692
      %v740 = vpack.c.b16 %v695, %v694
      %v741 = vpack.c.b16 %v697, %v696
      %v742 = vpack.c.b16 %v699, %v698
      %v743 = vpack.c.b16 %v701, %v700
      %v744 = vpack.c.b16 %v703, %v702
      %v745 = vpack.c.b16 %v705, %v704
      %v746 = vpack.c.b16 %v707, %v706
      %v747 = vpack.c.b16 %v709, %v708
      %v748 = vpack.c.b16 %v711, %v710
      %v749 = vpack.c.b16 %v713, %v712
      %v750 = vpack.c.b16 %v715, %v714
      %v751 = vpack.c.b16 %v717, %v716
      %v752 = vpack.c.b16 %v719, %v718
      %v753 = vpack.c.b16 %v721, %v720
      %v754 = vpack.c.b16 %v723, %v722
      %v755 = vpack.c.b16 %v725, %v724
      %v756 = vpack.c.b16 %v727, %v726
      %v757 = vpack.c.b16 %v729, %v728
      %v758 = vpack.c.b16 %v731, %v730
      %v759 = vpack.c.b16 %v733, %v732
      %v760 = vpack.c.b16 %v735, %v734
      %v761 = vpack.c.b16 %v737, %v736
      %786 = vmatprep.subr.bf16.mxu0 0
      %787 = vmatpush1.bf16.msra.mxu0 %v738
      %788 = vmatprep.subr.bf16.mxu0 0
      %789 = vmatpush1.bf16.msra.mxu0 %v739
      %790 = vmatprep.subr.bf16.mxu0 0
      %791 = vmatpush1.bf16.msra.mxu0 %v740
      %792 = vmatprep.subr.bf16.mxu0 0
      %793 = vmatpush1.bf16.msra.mxu0 %v741
      %794 = vmatprep.subr.bf16.mxu0 0
      %795 = vmatpush1.bf16.msra.mxu0 %v742
      %796 = vmatprep.subr.bf16.mxu0 0
      %797 = vmatpush1.bf16.msra.mxu0 %v743
      %798 = vmatprep.subr.bf16.mxu0 0
      %799 = vmatpush1.bf16.msra.mxu0 %v744
      %800 = vmatprep.subr.bf16.mxu0 0
      %801 = vmatpush1.bf16.msra.mxu0 %v745
      %802 = vmatprep.subr.bf16.mxu0 0
      %803 = vmatpush1.bf16.msra.mxu0 %v746
      %804 = vmatprep.subr.bf16.mxu0 0
      %805 = vmatpush1.bf16.msra.mxu0 %v747
      %806 = vmatprep.subr.bf16.mxu0 0
      %807 = vmatpush1.bf16.msra.mxu0 %v748
      %808 = vmatprep.subr.bf16.mxu0 0
      %809 = vmatpush1.bf16.msra.mxu0 %v749
      %810 = vmatprep.subr.bf16.mxu0 0
      %811 = vmatpush1.bf16.msra.mxu0 %v750
      %812 = vmatprep.subr.bf16.mxu0 0
      %813 = vmatpush1.bf16.msra.mxu0 %v751
      %814 = vmatprep.subr.bf16.mxu0 0
      %815 = vmatpush1.bf16.msra.mxu0 %v752
      %816 = vmatprep.subr.bf16.mxu0 0
      %817 = vmatpush1.bf16.msra.mxu0 %v753
      %818 = vmatprep.mubr.bf16.mxu0 %v582
      %819 = vmatmul.mubr.bf16.gmra.mrb[0].mxu0 %v581
      %v820 = vpop.f32.mrb[0].mxu0
      %v821 = vadd.f32 %v640, %v820
      %v822 = vpop.f32.mrb[0].mxu0
      %v823 = vpop.f32.mrb[0].mxu0
      %v824 = vadd.f32 %v640, %v823
      %v825 = vpop.f32.mrb[0].mxu0
      %826 = vmatprep.mubr.bf16.mxu0 %v585
      %827 = vmatmul.mubr.bf16.gmra.mrb[0].mxu0 %v584
      %v828 = vpop.f32.mrb[0].mxu0
      %v829 = vadd.f32 %v640, %v828
      %v830 = vpop.f32.mrb[0].mxu0
      %v831 = vpop.f32.mrb[0].mxu0
      %v832 = vadd.f32 %v640, %v831
      %v833 = vpop.f32.mrb[0].mxu0
      %834 = vdwg.mxu0
      %835 = vmatprep.subr.bf16.mxu0 0
      %836 = vmatpush1.bf16.msra.mxu0 %v754
      %837 = vmatprep.subr.bf16.mxu0 0
      %838 = vmatpush1.bf16.msra.mxu0 %v755
      %839 = vmatprep.subr.bf16.mxu0 0
      %840 = vmatpush1.bf16.msra.mxu0 %v756
      %841 = vmatprep.subr.bf16.mxu0 0
      %842 = vmatpush1.bf16.msra.mxu0 %v757
      %843 = vmatprep.subr.bf16.mxu0 0
      %844 = vmatpush1.bf16.msra.mxu0 %v758
      %845 = vmatprep.subr.bf16.mxu0 0
      %846 = vmatpush1.bf16.msra.mxu0 %v759
      %847 = vmatprep.subr.bf16.mxu0 0
      %848 = vmatpush1.bf16.msra.mxu0 %v760
      %849 = vmatprep.subr.bf16.mxu0 0
      %850 = vmatpush1.bf16.msra.mxu0 %v761
      %851 = vmatprep.subr.bf16.mxu0 0
      %852 = vmatpush1.bf16.msra.mxu0 0
      %853 = vmatprep.subr.bf16.mxu0 0
      %854 = vmatpush1.bf16.msra.mxu0 0
      %855 = vmatprep.subr.bf16.mxu0 0
      %856 = vmatpush1.bf16.msra.mxu0 0
      %857 = vmatprep.subr.bf16.mxu0 0
      %858 = vmatpush1.bf16.msra.mxu0 0
      %859 = vmatprep.subr.bf16.mxu0 0
      %860 = vmatpush1.bf16.msra.mxu0 0
      %861 = vmatprep.subr.bf16.mxu0 0
      %862 = vmatpush1.bf16.msra.mxu0 0
      %863 = vmatprep.subr.bf16.mxu0 0
      %864 = vmatpush1.bf16.msra.mxu0 0
      %865 = vmatprep.subr.bf16.mxu0 0
      %866 = vmatpush1.bf16.msra.mxu0 0
      %867 = vmatprep.mubr.bf16.mxu0 0
      %868 = vmatmul.mubr.bf16.gmra.mrb[0].mxu0 %v583
      %v869 = vpop.f32.mrb[0].mxu0
      %v870 = vadd.f32 %v821, %v869
      %v871 = vpop.f32.mrb[0].mxu0
      %v872 = vpop.f32.mrb[0].mxu0
      %v873 = vadd.f32 %v824, %v872
      %v874 = vpop.f32.mrb[0].mxu0
      %875 = vmatprep.mubr.bf16.mxu0 0
      %876 = vmatmul.mubr.bf16.gmra.mrb[0].mxu0 %v586
      %v877 = vpop.f32.mrb[0].mxu0
      %v878 = vadd.f32 %v829, %v877
      %v879 = vpop.f32.mrb[0].mxu0
      %v880 = vpop.f32.mrb[0].mxu0
      %v881 = vadd.f32 %v832, %v880
      %v882 = vpop.f32.mrb[0].mxu0
      %883 = vdwg.mxu0
      %v884 = vrot.slane %v870, 7
      %v885 = vrot.slane %v873, 7
      %v886 = vrot.slane %v878, 7
      %v887 = vrot.slane %v881, 7
      %v888 = vsel %vm352, %v886, %v887
      %v889 = vsel %vm352, %v885, %v886
      %v890 = vsel %vm352, %v884, %v885
      %v891 = vsel %vm352, %v887, %v884
      %v892 = vsel %vm336, %v891, 0.0
      %v893 = vsel %vm337, %v890, 0.0
      %v894 = vsel %vm338, %v889, 0.0
      %v895 = vsel %vm339, %v888, 0.0
      %v896 = vrot.slane %v870, 1
      %v897 = vrot.slane %v873, 1
      %v898 = vrot.slane %v878, 1
      %v899 = vrot.slane %v881, 1
      %v900 = vsel %vm365, %v898, %v899
      %v901 = vsel %vm365, %v897, %v898
      %v902 = vsel %vm365, %v896, %v897
      %v903 = vsel %vm365, %v899, %v896
      %v904 = vsel %vm340, %v902, 0.0
      %v905 = vsel %vm341, %v901, 0.0
      %v906 = vsel %vm342, %v900, 0.0
      %v907 = vsel %vm343, %v903, 0.0
      %v908 = vpack.c.bf16 %v893, %v892
      %v909 = vpack.c.bf16 %v873, %v870
      %v910 = vpack.c.bf16 %v905, %v904
      %v911 = vpack.c.bf16 %v895, %v894
      %v912 = vpack.c.bf16 %v881, %v878
      %v913 = vpack.c.bf16 %v907, %v906
      %v914 = vld [vmem:[%s5] sm:$0xf]
      %v915 = vld [vmem:[%s5 + $0x4] sm:$0xf]
      %v916 = vld [vmem:[%s5 + $0x8] sm:$0xf]
      %v917 = vld [vmem:[%s5 + $0xc] sm:$0xf]
      %v918 = vld [vmem:[%s5 + $0x10] sm:$0xf]
      %v919 = vld [vmem:[%s5 + $0x14] sm:$0xf]
      %v920 = vld [vmem:[%s5 + $0x18] sm:$0xf]
      %v921 = vld [vmem:[%s5 + $0x1c] sm:$0xf]
      %v922 = vld [vmem:[%s5 + $0x20] sm:$0xf]
      %v923 = vld [vmem:[%s5 + $0x24] sm:$0xf]
      %v924 = vld [vmem:[%s5 + $0x28] sm:$0xf]
      %v925 = vld [vmem:[%s5 + $0x2c] sm:$0xf]
      %v926 = vld [vmem:[%s5 + $0x30] sm:$0xf]
      %v927 = vld [vmem:[%s5 + $0x34] sm:$0xf]
      %v928 = vld [vmem:[%s5 + $0x38] sm:$0xf]
      %v929 = vld [vmem:[%s5 + $0x3c] sm:$0xf]
      %v930 = vld [vmem:[%s5 + $0x40] sm:$0xf]
      %v931 = vld [vmem:[%s5 + $0x44] sm:$0xf]
      %v932 = vld [vmem:[%s5 + $0x48] sm:$0xf]
      %v933 = vld [vmem:[%s5 + $0x4c] sm:$0xf]
      %v934 = vld [vmem:[%s5 + $0x50] sm:$0xf]
      %v935 = vld [vmem:[%s5 + $0x54] sm:$0xf]
      %v936 = vld [vmem:[%s5 + $0x58] sm:$0xf]
      %v937 = vld [vmem:[%s5 + $0x5c] sm:$0xf]
      %v938 = vld [vmem:[%s5 + $0x60] sm:$0xf]
      %v939 = vld [vmem:[%s5 + $0x64] sm:$0xf]
      %v940 = vld [vmem:[%s5 + $0x68] sm:$0xf]
      %v941 = vld [vmem:[%s5 + $0x6c] sm:$0xf]
      %v942 = vld [vmem:[%s5 + $0x70] sm:$0xf]
      %v943 = vld [vmem:[%s5 + $0x74] sm:$0xf]
      %v944 = vld [vmem:[%s5 + $0x78] sm:$0xf]
      %v945 = vld [vmem:[%s5 + $0x7c] sm:$0xf]
      %v946 = vld [vmem:[%s5 + $0x80] sm:$0xf]
      %v947 = vld [vmem:[%s5 + $0x84] sm:$0xf]
      %v948 = vld [vmem:[%s5 + $0x88] sm:$0xf]
      %v949 = vld [vmem:[%s5 + $0x8c] sm:$0xf]
      %v950 = vld [vmem:[%s5 + $0x90] sm:$0xf]
      %v951 = vld [vmem:[%s5 + $0x94] sm:$0xf]
      %v952 = vld [vmem:[%s5 + $0x98] sm:$0xf]
      %v953 = vld [vmem:[%s5 + $0x9c] sm:$0xf]
      %v954 = vld [vmem:[%s5 + $0xa0] sm:$0xf]
      %v955 = vld [vmem:[%s5 + $0xa4] sm:$0xf]
      %v956 = vld [vmem:[%s5 + $0xa8] sm:$0xf]
      %v957 = vld [vmem:[%s5 + $0xac] sm:$0xf]
      %v958 = vld [vmem:[%s5 + $0xb0] sm:$0xf]
      %v959 = vld [vmem:[%s5 + $0xb4] sm:$0xf]
      %v960 = vld [vmem:[%s5 + $0xb8] sm:$0xf]
      %v961 = vld [vmem:[%s5 + $0xbc] sm:$0xf]
      %v962 = vld [vmem:[%s6] sm:$0x1]
      %v964 = vlaneseq
      %v965 = vshrl.u32 %v964, 7
      %v966 = vsub.s32 0, %v965
      %v967 = vrot.slane %v962, %v966
      %v1017 = vunpack.c.l.b16 %v914
      %v1018 = vunpack.c.l.b16 %v915
      %v1019 = vunpack.c.l.b16 %v916
      %v1020 = vunpack.c.l.b16 %v917
      %v1021 = vunpack.c.l.b16 %v918
      %v1022 = vunpack.c.l.b16 %v919
      %v1023 = vunpack.c.l.b16 %v920
      %v1024 = vunpack.c.l.b16 %v921
      %v1025 = vunpack.c.l.b16 %v922
      %v1026 = vunpack.c.l.b16 %v923
      %v1027 = vunpack.c.l.b16 %v924
      %v1028 = vunpack.c.l.b16 %v925
      %v1029 = vunpack.c.l.b16 %v926
      %v1030 = vunpack.c.l.b16 %v927
      %v1031 = vunpack.c.l.b16 %v928
      %v1032 = vunpack.c.l.b16 %v929
      %v1033 = vunpack.c.l.b16 %v930
      %v1034 = vunpack.c.l.b16 %v931
      %v1035 = vunpack.c.l.b16 %v932
      %v1036 = vunpack.c.l.b16 %v933
      %v1037 = vunpack.c.l.b16 %v934
      %v1038 = vunpack.c.l.b16 %v935
      %v1039 = vunpack.c.l.b16 %v936
      %v1040 = vunpack.c.l.b16 %v937
      %v1041 = vunpack.c.l.b16 %v938
      %v1042 = vunpack.c.l.b16 %v939
      %v1043 = vunpack.c.l.b16 %v940
      %v1044 = vunpack.c.l.b16 %v941
      %v1045 = vunpack.c.l.b16 %v942
      %v1046 = vunpack.c.l.b16 %v943
      %v1047 = vunpack.c.l.b16 %v944
      %v1048 = vunpack.c.l.b16 %v945
      %v1049 = vunpack.c.l.b16 %v946
      %v1050 = vunpack.c.l.b16 %v947
      %v1051 = vunpack.c.l.b16 %v948
      %v1052 = vunpack.c.l.b16 %v949
      %v1053 = vunpack.c.l.b16 %v950
      %v1054 = vunpack.c.l.b16 %v951
      %v1055 = vunpack.c.l.b16 %v952
      %v1056 = vunpack.c.l.b16 %v953
      %v1057 = vunpack.c.l.b16 %v954
      %v1058 = vunpack.c.l.b16 %v955
      %v1059 = vunpack.c.l.b16 %v956
      %v1060 = vunpack.c.l.b16 %v957
      %v1061 = vunpack.c.l.b16 %v958
      %v1062 = vunpack.c.l.b16 %v959
      %v1063 = vunpack.c.l.b16 %v960
      %v1064 = vunpack.c.l.b16 %v961
      %v1065 = vpack.c.b16 %v1018, %v1017
      %v1066 = vpack.c.b16 %v1020, %v1019
      %v1067 = vpack.c.b16 %v1022, %v1021
      %v1068 = vpack.c.b16 %v1024, %v1023
      %v1069 = vpack.c.b16 %v1026, %v1025
      %v1070 = vpack.c.b16 %v1028, %v1027
      %v1071 = vpack.c.b16 %v1030, %v1029
      %v1072 = vpack.c.b16 %v1032, %v1031
      %v1073 = vpack.c.b16 %v1034, %v1033
      %v1074 = vpack.c.b16 %v1036, %v1035
      %v1075 = vpack.c.b16 %v1038, %v1037
      %v1076 = vpack.c.b16 %v1040, %v1039
      %v1077 = vpack.c.b16 %v1042, %v1041
      %v1078 = vpack.c.b16 %v1044, %v1043
      %v1079 = vpack.c.b16 %v1046, %v1045
      %v1080 = vpack.c.b16 %v1048, %v1047
      %v1081 = vpack.c.b16 %v1050, %v1049
      %v1082 = vpack.c.b16 %v1052, %v1051
      %v1083 = vpack.c.b16 %v1054, %v1053
      %v1084 = vpack.c.b16 %v1056, %v1055
      %v1085 = vpack.c.b16 %v1058, %v1057
      %v1086 = vpack.c.b16 %v1060, %v1059
      %v1087 = vpack.c.b16 %v1062, %v1061
      %v1088 = vpack.c.b16 %v1064, %v1063
      %1113 = vmatprep.subr.bf16.mxu0 0
      %1114 = vmatpush1.bf16.msra.mxu0 %v1065
      %1115 = vmatprep.subr.bf16.mxu0 0
      %1116 = vmatpush1.bf16.msra.mxu0 %v1066
      %1117 = vmatprep.subr.bf16.mxu0 0
      %1118 = vmatpush1.bf16.msra.mxu0 %v1067
      %1119 = vmatprep.subr.bf16.mxu0 0
      %1120 = vmatpush1.bf16.msra.mxu0 %v1068
      %1121 = vmatprep.subr.bf16.mxu0 0
      %1122 = vmatpush1.bf16.msra.mxu0 %v1069
      %1123 = vmatprep.subr.bf16.mxu0 0
      %1124 = vmatpush1.bf16.msra.mxu0 %v1070
      %1125 = vmatprep.subr.bf16.mxu0 0
      %1126 = vmatpush1.bf16.msra.mxu0 %v1071
      %1127 = vmatprep.subr.bf16.mxu0 0
      %1128 = vmatpush1.bf16.msra.mxu0 %v1072
      %1129 = vmatprep.subr.bf16.mxu0 0
      %1130 = vmatpush1.bf16.msra.mxu0 %v1073
      %1131 = vmatprep.subr.bf16.mxu0 0
      %1132 = vmatpush1.bf16.msra.mxu0 %v1074
      %1133 = vmatprep.subr.bf16.mxu0 0
      %1134 = vmatpush1.bf16.msra.mxu0 %v1075
      %1135 = vmatprep.subr.bf16.mxu0 0
      %1136 = vmatpush1.bf16.msra.mxu0 %v1076
      %1137 = vmatprep.subr.bf16.mxu0 0
      %1138 = vmatpush1.bf16.msra.mxu0 %v1077
      %1139 = vmatprep.subr.bf16.mxu0 0
      %1140 = vmatpush1.bf16.msra.mxu0 %v1078
      %1141 = vmatprep.subr.bf16.mxu0 0
      %1142 = vmatpush1.bf16.msra.mxu0 %v1079
      %1143 = vmatprep.subr.bf16.mxu0 0
      %1144 = vmatpush1.bf16.msra.mxu0 %v1080
      %1145 = vmatprep.mubr.bf16.mxu0 %v909
      %1146 = vmatmul.mubr.bf16.gmra.mrb[0].mxu0 %v908
      %v1147 = vpop.f32.mrb[0].mxu0
      %v1148 = vadd.f32 %v967, %v1147
      %v1149 = vpop.f32.mrb[0].mxu0
      %v1150 = vpop.f32.mrb[0].mxu0
      %v1151 = vadd.f32 %v967, %v1150
      %v1152 = vpop.f32.mrb[0].mxu0
      %1153 = vmatprep.mubr.bf16.mxu0 %v912
      %1154 = vmatmul.mubr.bf16.gmra.mrb[0].mxu0 %v911
      %v1155 = vpop.f32.mrb[0].mxu0
      %v1156 = vadd.f32 %v967, %v1155
      %v1157 = vpop.f32.mrb[0].mxu0
      %v1158 = vpop.f32.mrb[0].mxu0
      %v1159 = vadd.f32 %v967, %v1158
      %v1160 = vpop.f32.mrb[0].mxu0
      %1161 = vdwg.mxu0
      %1162 = vmatprep.subr.bf16.mxu0 0
      %1163 = vmatpush1.bf16.msra.mxu0 %v1081
      %1164 = vmatprep.subr.bf16.mxu0 0
      %1165 = vmatpush1.bf16.msra.mxu0 %v1082
      %1166 = vmatprep.subr.bf16.mxu0 0
      %1167 = vmatpush1.bf16.msra.mxu0 %v1083
      %1168 = vmatprep.subr.bf16.mxu0 0
      %1169 = vmatpush1.bf16.msra.mxu0 %v1084
      %1170 = vmatprep.subr.bf16.mxu0 0
      %1171 = vmatpush1.bf16.msra.mxu0 %v1085
      %1172 = vmatprep.subr.bf16.mxu0 0
      %1173 = vmatpush1.bf16.msra.mxu0 %v1086
      %1174 = vmatprep.subr.bf16.mxu0 0
      %1175 = vmatpush1.bf16.msra.mxu0 %v1087
      %1176 = vmatprep.subr.bf16.mxu0 0
      %1177 = vmatpush1.bf16.msra.mxu0 %v1088
      %1178 = vmatprep.subr.bf16.mxu0 0
      %1179 = vmatpush1.bf16.msra.mxu0 0
      %1180 = vmatprep.subr.bf16.mxu0 0
      %1181 = vmatpush1.bf16.msra.mxu0 0
      %1182 = vmatprep.subr.bf16.mxu0 0
      %1183 = vmatpush1.bf16.msra.mxu0 0
      %1184 = vmatprep.subr.bf16.mxu0 0
      %1185 = vmatpush1.bf16.msra.mxu0 0
      %1186 = vmatprep.subr.bf16.mxu0 0
      %1187 = vmatpush1.bf16.msra.mxu0 0
      %1188 = vmatprep.subr.bf16.mxu0 0
      %1189 = vmatpush1.bf16.msra.mxu0 0
      %1190 = vmatprep.subr.bf16.mxu0 0
      %1191 = vmatpush1.bf16.msra.mxu0 0
      %1192 = vmatprep.subr.bf16.mxu0 0
      %1193 = vmatpush1.bf16.msra.mxu0 0
      %1194 = vmatprep.mubr.bf16.mxu0 0
      %1195 = vmatmul.mubr.bf16.gmra.mrb[0].mxu0 %v910
      %v1196 = vpop.f32.mrb[0].mxu0
      %v1197 = vadd.f32 %v1148, %v1196
      %v1198 = vpop.f32.mrb[0].mxu0
      %v1199 = vpop.f32.mrb[0].mxu0
      %v1200 = vadd.f32 %v1151, %v1199
      %v1201 = vpop.f32.mrb[0].mxu0
      %1202 = vmatprep.mubr.bf16.mxu0 0
      %1203 = vmatmul.mubr.bf16.gmra.mrb[0].mxu0 %v913
      %v1204 = vpop.f32.mrb[0].mxu0
      %v1205 = vadd.f32 %v1156, %v1204
      %v1206 = vpop.f32.mrb[0].mxu0
      %v1207 = vpop.f32.mrb[0].mxu0
      %v1208 = vadd.f32 %v1159, %v1207
      %v1209 = vpop.f32.mrb[0].mxu0
      %1210 = vdwg.mxu0
      %v1211 = vmax.f32 %v1197, 0.0
      %v1212 = vmax.f32 %v1200, 0.0
      %v1213 = vmax.f32 %v1205, 0.0
      %v1214 = vmax.f32 %v1208, 0.0
      %1215 = vst [vmem:[%s280] sm:$0xff] %v1211
      %1216 = vst [vmem:[%s280 + $0x8] sm:$0xff] %v1212
      %1217 = vst [vmem:[%s280 + $0x10] sm:$0xff] %v1213
      %1218 = vst [vmem:[%s280 + $0x18] sm:$0xff] %v1214
      %s1219 = smul.u32 4, %s18
      %p1220 = scmp.lt.s32.totalorder %s1219, 7
      %s1221 = scalar_select %p1220, %s1219, 7
      %s1222 = smul.addr %s1221, 8
      %s1223 = scalar_lea.vmem %s7, %s1222
      // Predicated region
      $region49: #{_forward_nchw.1} parent=47 // pred_check
        %p1224 = pneg %p188
      $region50: #{_forward_nchw.1} parent=47 // pred_check_branch
        %1226 = sbr.rel (%p1224) target = $region52
      $region51: #{_forward_nchw.1} parent=47 // pred_region
        %s1227 = smul.u32 4, %s18
      $region52: #{_forward_nchw.1} parent=47 // pred_fallthru
        _
    $region48: #{_forward_nchw.1} parent=5 // pred_fallthru
      _
    %p1228 = scmp.le.s32.totalorder 2, %s13
    // Predicated region
    $region53: #{_forward_nchw.1} parent=5 // pred_check
      %p1229 = pneg %p1228
    $region54: #{_forward_nchw.1} parent=5 // pred_check_branch
      %1231 = sbr.rel (%p1229) target = $region56
    $region55: #{_forward_nchw.1} parent=5 // pred_region
      %s1232 = ssub.s32 %s13, 2
      // Predicated region
      $region57: #{_forward_nchw.1} parent=55 // pred_check
        %p1233 = pneg %p194
      $region58: #{_forward_nchw.1} parent=55 // pred_check_branch
        %1235 = sbr.rel (%p1233) target = $region60
      $region59: #{_forward_nchw.1} parent=55 // pred_region
        %s1236 = smul.u32 4, %s19
        %p1237 = scmp.lt.s32.totalorder %s1236, 7
        %s1238 = scalar_select %p1237, %s1236, 7
        %s1239 = smul.addr %s1238, 8
        %s1240 = scalar_lea.vmem %s7, %s1239
      $region60: #{_forward_nchw.1} parent=55 // pred_fallthru
        _
    $region56: #{_forward_nchw.1} parent=5 // pred_fallthru
      _
  $region6: #{_forward_nchw.1} parent=0 // loop_footer
    %s17 = sadd.s32 1, %s13
  $region7: #{_forward_nchw.1} parent=0 // loop_footer_branch
    %12 = sbr.rel target = $region3
  $region8: #{_forward_nchw.1} parent=0 // loop_exit
    _

</llo_original>
